<compile_context>
chip_gen: v7x
topology: tpu7x:2x2x1
jax: 0.10.0
libtpu: 0.0.40
codegen_flags: <defaults>
</compile_context>

<pallas_src>
import jax
import jax.numpy as jnp
from jax import lax
from jax.experimental import pallas as pl
from jax.experimental.pallas import tpu as pltpu


def _round_up(a, m):
    return (a + m - 1) // m * m


def _vmem_capacity_bytes():
    """Physical per-core VMEM (128 MiB on v5e/v6e, 64 MiB on v7x); safe fallback."""
    try:
        info = pltpu.get_tpu_info()
        cap = getattr(info, "vmem_capacity_bytes", None)
        if cap:
            return int(cap)
    except Exception:
        pass
    return 64 * 2 ** 20  # conservative (v7x per-TensorCore)


def _buffered_spec(block_shape, index_map, buffer_count):
    """BlockSpec with N-deep pipelining when requested/supported; default otherwise."""
    if buffer_count != 2 and hasattr(pl, "Buffered"):
        try:
            return pl.BlockSpec(block_shape, index_map,
                                pipeline_mode=pl.Buffered(buffer_count))
        except TypeError:  # older BlockSpec signature without pipeline_mode
            pass
    return pl.BlockSpec(block_shape, index_map)


def _odconv_kernel(w_ref, p_ref, o_ref):
    # w_ref : (Cout_p, KKC_p)  per-batch aggregated weight (kn, sp⊗ch, fi all folded in)
    # p_ref : (KKC_p, T)       im2col patch tile, tap-major rows (j = t*Cin + c)
    # o_ref : (Cout_p, T)      lane-dense output tile (T multiple of 128)
    o_ref[...] = jnp.dot(w_ref[...], p_ref[...],
                         preferred_element_type=jnp.float32).astype(o_ref.dtype)


def odconv2d(x, params, *, kernel_size, stride=1, padding=1, dilation=1,
             groups=1, kernel_num=4, compute_dtype=jnp.bfloat16,
             out_dtype=None, return_padded=False):
    assert groups == 1  # TODO(synk): grouped / depthwise variant not implemented
    # TODO(synk): kernel_size==1 / kernel_num==1 "skip"-attention branches not implemented
    B, Cin, H, W = x.shape
    K = kernel_size
    KK = K * K
    Kn = kernel_num
    Cout = params['fi_w'].shape[0]
    out_dtype = x.dtype if out_dtype is None else out_dtype

    Ho = (H + 2 * padding - dilation * (K - 1) - 1) // stride + 1
    Wo = (W + 2 * padding - dilation * (K - 1) - 1) // stride + 1
    HoWo = Ho * Wo

    # ---- Attention head: batched XLA (f32), hoisted out of the kernel ----
    pooled = jnp.mean(x.astype(jnp.float32), axis=(2, 3))                    # (B, Cin)
    hidden = jax.nn.relu(pooled @ params['fc_w'].T)                          # (B, A)
    ch = jax.nn.sigmoid(hidden @ params['ch_w'].T + params['ch_b'])          # (B, Cin)
    fi = jax.nn.sigmoid(hidden @ params['fi_w'].T + params['fi_b'])          # (B, Cout)
    sp = jax.nn.sigmoid(hidden @ params['sp_w'].T + params['sp_b'])          # (B, KK)
    kn = jax.nn.softmax(hidden @ params['kn_w'].T + params['kn_b'], axis=-1) # (B, Kn)

    # ---- Per-batch aggregated weight (f32 aggregation, single cast at the end) ----
    # Candidate kernels, columns tap-major (j = t*Cin + c) to match the patch layout.
    w_flat = (params['weight'].astype(jnp.float32)
              .reshape(Kn, Cout, Cin, KK).transpose(0, 1, 3, 2)
              .reshape(Kn, Cout, KK * Cin))
    agg = jnp.einsum('bn,noj->boj', kn, w_flat)                              # (B,Cout,KK*Cin)
    scale = (sp[:, :, None] * ch[:, None, :]).reshape(B, 1, KK * Cin)        # sp ⊗ ch
    agg = agg * scale * fi[:, :, None]          # fold spatial, channel and filter attn
    agg = agg.astype(compute_dtype)

    # ---- Alignment padding (contraction and output-row dims) ----
    col_align = 16 if jnp.dtype(compute_dtype).itemsize == 2 else 8
    KKC = KK * Cin
    KKC_p = _round_up(KKC, col_align)
    Cout_p = _round_up(Cout, 8)
    agg = jnp.pad(agg, ((0, 0), (0, Cout_p - Cout), (0, KKC_p - KKC)))

    # ---- im2col glue (compute dtype, tap-major): (B, KK*Cin, HoWo) ----
    # TODO(synk): replace with in-kernel halo DMA on v5e/v6e to avoid K*K HBM inflation.
    xc = x.astype(compute_dtype)
    xpad = jnp.pad(xc, ((0, 0), (0, 0), (padding, padding), (padding, padding)))
    cols = []
    for kh in range(K):
        for kw in range(K):
            h0, w0 = kh * dilation, kw * dilation
            sl = xpad[:, :, h0:h0 + stride * (Ho - 1) + 1:stride,
                            w0:w0 + stride * (Wo - 1) + 1:stride]            # (B,Cin,Ho,Wo)
            cols.append(sl.reshape(B, Cin, HoWo))
    patches = jnp.stack(cols, axis=1).reshape(B, KKC, HoWo)

    # ---- Hardware-derived VMEM budget and adaptive spatial tile ----
    cd = jnp.dtype(compute_dtype).itemsize
    od = jnp.dtype(out_dtype).itemsize
    vmem_cap = _vmem_capacity_bytes()
    vmem_target = min(int(vmem_cap * 0.85), vmem_cap - (8 << 20))
    w_bytes = Cout_p * KKC_p * cd                       # one weight buffer (x2 pipelined)
    budget = vmem_target - 2 * w_bytes - (2 << 20)      # headroom for sems/internal scratch

    def tile_bytes(t, n_patch_bufs):
        return n_patch_bufs * KKC_p * t * cd + 2 * Cout_p * t * od

    T_full = _round_up(HoWo, 128)
    cands = [t for t in range(128, min(T_full, 2048) + 1, 128)
             if tile_bytes(t, 2) <= budget]
    if not cands:
        cands = [128]
    # Minimize zero-padding waste; prefer the larger tile on ties (fewer grid steps).
    T = min(cands, key=lambda t: (_round_up(HoWo, t) - HoWo, -t))
    HoWo_pad = _round_up(HoWo, T)
    n_tiles = HoWo_pad // T
    # Deeper patch pipelining only when it fits and there are enough tiles to matter.
    n_patch_bufs = 3 if (n_tiles >= 3 and tile_bytes(T, 3) <= budget) else 2

    patches = jnp.pad(patches, ((0, 0), (0, KKC_p - KKC), (0, HoWo_pad - HoWo)))

    needed = 2 * w_bytes + tile_bytes(T, n_patch_bufs) + (2 << 20)
    vmem_limit = int(min(max(needed, 32 << 20), vmem_cap - (2 << 20)))

    out = pl.pallas_call(
        _odconv_kernel,
        out_shape=jax.ShapeDtypeStruct((B, Cout_p, HoWo_pad), out_dtype),
        grid_spec=pltpu.PrefetchScalarGridSpec(
            num_scalar_prefetch=0,
            grid=(B, n_tiles),
            in_specs=[
                pl.BlockSpec((None, Cout_p, KKC_p), lambda b, s: (b, 0, 0)),
                _buffered_spec((None, KKC_p, T), lambda b, s: (b, 0, s), n_patch_bufs),
            ],
            out_specs=pl.BlockSpec((None, Cout_p, T), lambda b, s: (b, 0, s)),
        ),
        compiler_params=pltpu.CompilerParams(
            dimension_semantics=("parallel", "parallel"),
            vmem_limit_bytes=vmem_limit),
    )(agg, patches)

    if return_padded:
        # Padded layout (B, Cout_p, HoWo_pad); valid region is [:, :Cout, :HoWo].
        return out
    return out[:, :Cout, :HoWo].reshape(B, Cout, Ho, Wo)


def init_params(key, in_planes, out_planes, kernel_size, kernel_num,
                reduction=0.0625, min_channel=16):
    """Deterministic synthetic init matching the module's parameter shapes."""
    A = max(int(in_planes * reduction), min_channel)
    K = kernel_size
    keys = jax.random.split(key, 6)

    def kaiming(k, shape, fan_out):   # kaiming_normal_(mode='fan_out', relu)
        std = (2.0 / fan_out) ** 0.5
        return std * jax.random.normal(k, shape, jnp.float32)

    return dict(
        fc_w=kaiming(keys[0], (A, in_planes), A),
        ch_w=kaiming(keys[1], (in_planes, A), in_planes),
        ch_b=jnp.zeros((in_planes,), jnp.float32),
        fi_w=kaiming(keys[2], (out_planes, A), out_planes),
        fi_b=jnp.zeros((out_planes,), jnp.float32),
        sp_w=kaiming(keys[3], (K * K, A), K * K),
        sp_b=jnp.zeros((K * K,), jnp.float32),
        kn_w=kaiming(keys[4], (kernel_num, A), kernel_num),
        kn_b=jnp.zeros((kernel_num,), jnp.float32),
        weight=kaiming(keys[5], (kernel_num, out_planes, in_planes, K, K),
                       out_planes * K * K),
    )


def odconv2d_ref(x, params, *, kernel_size, stride=1, padding=1, dilation=1,
                 kernel_num=4):
    """Pure-JAX reference mirroring the PyTorch forward (for validation)."""
    B, Cin, H, W = x.shape
    K = kernel_size
    Cout = params['fi_w'].shape[0]
    pooled = jnp.mean(x, axis=(2, 3))                                  # (B, Cin)
    hidden = jax.nn.relu(pooled @ params['fc_w'].T)                    # (B, A)
    ch = jax.nn.sigmoid(hidden @ params['ch_w'].T + params['ch_b'])    # (B, Cin)
    fi = jax.nn.sigmoid(hidden @ params['fi_w'].T + params['fi_b'])    # (B, Cout)
    sp = jax.nn.sigmoid(hidden @ params['sp_w'].T + params['sp_b']).reshape(B, 1, 1, K, K)
    kn = jax.nn.softmax(hidden @ params['kn_w'].T + params['kn_b'], axis=1)
    w = params['weight']                                               # (Kn,Cout,Cin,K,K)
    agg = jnp.einsum('bn,nocij->bocij', kn, w) * sp                    # (B,Cout,Cin,K,K)
    xs = (x * ch[:, :, None, None]).reshape(1, B * Cin, H, W)
    out = lax.conv_general_dilated(
        xs, agg.reshape(B * Cout, Cin, K, K),
        window_strides=(stride, stride),
        padding=[(padding, padding), (padding, padding)],
        rhs_dilation=(dilation, dilation),
        dimension_numbers=('NCHW', 'OIHW', 'NCHW'),
        feature_group_count=B)
    Ho, Wo = out.shape[-2:]
    return out.reshape(B, Cout, Ho, Wo) * fi[:, :, None, None]


if __name__ == "__main__":
    key = jax.random.PRNGKey(0)
    kx, kp = jax.random.split(key)
    B, Cin, Cout, H, W = 2, 4, 8, 16, 16
    K, Kn = 3, 4

    x = jax.random.normal(kx, (B, Cin, H, W), jnp.float32)
    params = init_params(kp, Cin, Cout, K, Kn)

    ref = odconv2d_ref(x, params, kernel_size=K, kernel_num=Kn)

    # f32 data path: must match the reference tightly.
    out32 = jax.block_until_ready(
        odconv2d(x, params, kernel_size=K, kernel_num=Kn,
                 compute_dtype=jnp.float32))
    assert out32.shape == (B, Cout, H, W), out32.shape
    err32 = float(jnp.max(jnp.abs(out32 - ref)))
    assert err32 < 1e-3, f"f32 max abs err {err32}"

    # bf16 data path (default; f32 aggregation in wrapper, f32 accumulation on MXU).
    out16 = jax.block_until_ready(
        odconv2d(x, params, kernel_size=K, kernel_num=Kn))
    assert out16.shape == (B, Cout, H, W), out16.shape
    err16 = float(jnp.max(jnp.abs(out16 - ref)))
    assert err16 < 5e-2, f"bf16 max abs err {err16}"

    print("KERNEL_OK")
</pallas_src>

<mosaic_0001>
module attributes {stable_mosaic.version = 11 : i64} {
  func.func @_odconv_kernel(%arg0: i32, %arg1: i32, %arg2: memref<1x8x40xf32, #tpu.memory_space<vmem>>, %arg3: memref<1x40x256xf32, #tpu.memory_space<vmem>>, %arg4: memref<1x8x256xf32, #tpu.memory_space<vmem>>) attributes {dimension_semantics = [#tpu.dimension_semantics<parallel>, #tpu.dimension_semantics<parallel>], iteration_bounds = array<i64: 2, 1>, scalar_prefetch = 0 : i64, scratch_operands = 0 : i64, tpu.core_type = #tpu.core_type<tc>, window_params = [{transform_indices = @transform_0, window_bounds = array<i64: 1, 8, 40>}, {transform_indices = @transform_1, window_bounds = array<i64: 1, 40, 256>}, {transform_indices = @transform_2, window_bounds = array<i64: 1, 8, 256>}]} {
    %c0 = arith.constant 0 : index
    %c0_0 = arith.constant 0 : index
    %c0_1 = arith.constant 0 : index
    %0 = vector.load %arg2[%c0, %c0_0, %c0_1] : memref<1x8x40xf32, #tpu.memory_space<vmem>>, vector<1x8x40xf32>
    %1 = vector.shape_cast %0 : vector<1x8x40xf32> to vector<8x40xf32>
    %c0_2 = arith.constant 0 : index
    %c0_3 = arith.constant 0 : index
    %c0_4 = arith.constant 0 : index
    %2 = vector.load %arg3[%c0_2, %c0_3, %c0_4] : memref<1x40x256xf32, #tpu.memory_space<vmem>>, vector<1x40x256xf32>
    %3 = vector.shape_cast %2 : vector<1x40x256xf32> to vector<40x256xf32>
    %cst = arith.constant dense<0.000000e+00> : vector<8x256xf32>
    %4 = tpu.matmul %1, %3, %cst {dimension_numbers = #tpu.dot_dimension_numbers<[1], [0], [0], [1], [0, 0, 1, 1], [], []>} : vector<8x40xf32>, vector<40x256xf32>, vector<8x256xf32> -> vector<8x256xf32>
    %c0_5 = arith.constant 0 : index
    %c0_6 = arith.constant 0 : index
    %c0_7 = arith.constant 0 : index
    %5 = vector.load %arg4[%c0_5, %c0_6, %c0_7] : memref<1x8x256xf32, #tpu.memory_space<vmem>>, vector<1x8x256xf32>
    %6 = vector.shape_cast %5 : vector<1x8x256xf32> to vector<8x256xf32>
    %7 = vector.shape_cast %4 : vector<8x256xf32> to vector<1x8x256xf32>
    tpu.vector_store %arg4[%c0_5, %c0_6, %c0_7], %7 {strides = array<i32>} : memref<1x8x256xf32, #tpu.memory_space<vmem>>, vector<1x8x256xf32>,
    return
  }
  func.func @transform_0(%arg0: i32, %arg1: i32) -> (i32, i32, i32) {
    %c0_i32 = arith.constant 0 : i32
    %c0_i32_0 = arith.constant 0 : i32
    %c0_i32_1 = arith.constant 0 : i32
    return %arg0, %c0_i32, %c0_i32_0 : i32, i32, i32
  }
  func.func @transform_1(%arg0: i32, %arg1: i32) -> (i32, i32, i32) {
    %c0_i32 = arith.constant 0 : i32
    %c0_i32_0 = arith.constant 0 : i32
    return %arg0, %c0_i32, %arg1 : i32, i32, i32
  }
  func.func @transform_2(%arg0: i32, %arg1: i32) -> (i32, i32, i32) {
    %c0_i32 = arith.constant 0 : i32
    %c0_i32_0 = arith.constant 0 : i32
    return %arg0, %c0_i32, %arg1 : i32, i32, i32
  }
}

</mosaic_0001>

<llo_original>
// kernel: tpu_custom_call.1
$region0: #{tpu_custom_call.1}
  #allocation0 [shape = 'u32[]', space=smem, size = 0x4, offset = 0x4, fixed_abs, tag = 'smem constant byte address 0x4 - core index']
  #allocation1 [shape = 'u32[144,128]{1,0:T(1,128)}', space=vmem, size = 0x12000, scoped, tag = 'internal scratch']
  %s0 = inlined_call_operand.hbm [shape: f32[2,8,40], index: 0, kind: input, shape index: {}]
  %s1 = inlined_call_operand.hbm [shape: f32[2,40,256], index: 1, kind: input, shape index: {}]
  %s2 = inlined_call_operand.hbm [shape: f32[2,8,256], index: 2, kind: output, shape index: {}]
  %s3 = sld [smem:[#allocation0]]
  $region49: #{tpu_custom_call.1} parent=0
    _
  %s5 = ssub.s32 1, %s3
  %s6 = scalar_select 0, %s5, %s3
  $region1: #{tpu_custom_call.1} parent=0
    #allocation2 [shape = 'u8[8192]{0}', space=vmem, size = 0x2000, scoped, tag = 'input window, operand 0']
    #allocation3 [shape = 's32[2]{0}', space=sflag, size = 0x8, scoped, tag = 'scoped memory for tpu_custom_call.1']
    #allocation4 [shape = 's32[2]{0}', space=sflag, size = 0x8, scoped, tag = 'scoped memory for tpu_custom_call.1']
    #allocation5 [shape = 'u8[81920]{0}', space=vmem, size = 0x14000, scoped, tag = 'input window, operand 1']
    #allocation6 [shape = 's32[2]{0}', space=sflag, size = 0x8, scoped, tag = 'scoped memory for tpu_custom_call.1']
    #allocation7 [shape = 'u8[16384]{0}', space=vmem, size = 0x4000, scoped, tag = 'output window, operand 0']
    %7 = vsyncpa [#allocation3], 0
    %s8 = scalar_lea.sflag [#allocation3], 1
    %9 = vsyncpa %s8, 0
    %10 = vsyncpa [#allocation6], 0
    %s11 = scalar_lea.sflag [#allocation6], 1
    %12 = vsyncpa %s11, 0
    %13 = vsyncpa [#allocation4], 0
    %s14 = scalar_lea.sflag [#allocation4], 1
    %15 = vsyncpa %s14, 0
    loop: start=0, step=1, limit=4
    $region2: #{tpu_custom_call.1} parent=1 // loop_pre_header
      _
    $region3: #{tpu_custom_call.1} parent=1 // loop_header
      %s17 = sphi 0, %s21
      %p18 = scmp.ge.s32.totalorder %s17, 4
      %s24 = sphi 0, %s36
      %s25 = sphi 0, %s32
      %s26 = sphi 0, %s24
      %s27 = sphi 0, %s25
      %s28 = sphi 0, %s26
      %s29 = sphi 0, %s27
      %s39 = sphi 0, %s41
      %s42 = sphi 0, %s39
      %s43 = sphi 0, %s42
      %s59 = sphi 0, %s43
      %s67 = sphi 0, %s69
      %s70 = sphi 0, %s67
      %s71 = sphi 0, %s70
      %s87 = sphi 0, %s71
      %s95 = sphi 0, %s97
      %s98 = sphi 0, %s95
      %s99 = sphi 0, %s98
      %s115 = sphi 0, %s99
    $region4: #{tpu_custom_call.1} parent=1 // loop_header_branch
      %20 = sbr.rel (%p18) target = $region8
    $region5: #{tpu_custom_call.1} parent=1 // loop_body
      %s22 = ssub.s32 %s17, 1
      %s23 = ssub.s32 %s17, 2
      %s30 = sadd.s32 1, %s25
      %p31 = scmp.ge.s32.totalorder %s30, 1
      %s32 = scalar_select %p31, 0, %s30
      %s33 = sadd.s32 1, %s24
      %s34 = scalar_select %p31, %s33, %s24
      %p35 = scmp.ge.s32.totalorder %s34, 2
      %s36 = scalar_select %p35, 0, %s34
      %s37 = ssub.s32 %s24, %s36
      %p38 = scmp.eq.s32.totalorder %s37, 0
      %s40 = sadd.s32 %s39, 1
      %s41 = scalar_select %p38, %s39, %s40
      %p44 = pneg %p38
      %p45 = scmp.eq.s32.totalorder %s17, 1
      %p46 = por %p44, %p45
      %p47 = scmp.ne.s32.totalorder %s39, %s42
      %p48 = scmp.eq.s32.totalorder %s17, 0
      %p49 = por %p47, %p48
      %p50 = scmp.ne.s32.totalorder %s39, %s42
      %p51 = scmp.eq.s32.totalorder %s22, 1
      %p52 = por %p50, %p51
      %p53 = scmp.ne.s32.totalorder %s42, %s43
      %p54 = scmp.eq.s32.totalorder %s22, 0
      %p55 = por %p53, %p54
      %p56 = scmp.ne.s32.totalorder %s42, %s43
      %p57 = scmp.eq.s32.totalorder %s23, 1
      %p58 = por %p56, %p57
      %p60 = scmp.ne.s32.totalorder %s43, %s59
      %p61 = scmp.eq.s32.totalorder %s23, 0
      %p62 = por %p60, %p61
      %s63 = ssub.s32 %s24, %s36
      %s64 = ssub.s32 %s25, %s32
      %s65 = sor.u32 %s63, %s64
      %p66 = scmp.eq.s32.totalorder %s65, 0
      %s68 = sadd.s32 %s67, 1
      %s69 = scalar_select %p66, %s67, %s68
      %p72 = pneg %p66
      %p73 = scmp.eq.s32.totalorder %s17, 1
      %p74 = por %p72, %p73
      %p75 = scmp.ne.s32.totalorder %s67, %s70
      %p76 = scmp.eq.s32.totalorder %s17, 0
      %p77 = por %p75, %p76
      %p78 = scmp.ne.s32.totalorder %s67, %s70
      %p79 = scmp.eq.s32.totalorder %s22, 1
      %p80 = por %p78, %p79
      %p81 = scmp.ne.s32.totalorder %s70, %s71
      %p82 = scmp.eq.s32.totalorder %s22, 0
      %p83 = por %p81, %p82
      %p84 = scmp.ne.s32.totalorder %s70, %s71
      %p85 = scmp.eq.s32.totalorder %s23, 1
      %p86 = por %p84, %p85
      %p88 = scmp.ne.s32.totalorder %s71, %s87
      %p89 = scmp.eq.s32.totalorder %s23, 0
      %p90 = por %p88, %p89
      %s91 = ssub.s32 %s24, %s36
      %s92 = ssub.s32 %s25, %s32
      %s93 = sor.u32 %s91, %s92
      %p94 = scmp.eq.s32.totalorder %s93, 0
      %s96 = sadd.s32 %s95, 1
      %s97 = scalar_select %p94, %s95, %s96
      %p100 = pneg %p94
      %p101 = scmp.eq.s32.totalorder %s17, 1
      %p102 = por %p100, %p101
      %p103 = scmp.ne.s32.totalorder %s95, %s98
      %p104 = scmp.eq.s32.totalorder %s17, 0
      %p105 = por %p103, %p104
      %p106 = scmp.ne.s32.totalorder %s95, %s98
      %p107 = scmp.eq.s32.totalorder %s22, 1
      %p108 = por %p106, %p107
      %p109 = scmp.ne.s32.totalorder %s98, %s99
      %p110 = scmp.eq.s32.totalorder %s22, 0
      %p111 = por %p109, %p110
      %p112 = scmp.ne.s32.totalorder %s98, %s99
      %p113 = scmp.eq.s32.totalorder %s23, 1
      %p114 = por %p112, %p113
      %p116 = scmp.ne.s32.totalorder %s99, %s115
      %p117 = scmp.eq.s32.totalorder %s23, 0
      %p118 = por %p116, %p117
      %p119 = scmp.le.s32.totalorder 1, %s17
      %p120 = scmp.lt.s32.totalorder %s17, 3
      %p121 = pnand %p119, %p120
      %p122 = pneg %p121
      // Predicated region
      $region9: #{tpu_custom_call.1} parent=5 // pred_check
        _
      $region10: #{tpu_custom_call.1} parent=5 // pred_check_branch
        %124 = sbr.rel (%p121) target = $region12
      $region11: #{tpu_custom_call.1} parent=5 // pred_region
        %s125 = ssub.s32 %s17, 1
      $region12: #{tpu_custom_call.1} parent=5 // pred_fallthru
        _
      %p126 = scmp.lt.s32.totalorder %s17, 2
      // Predicated region
      $region13: #{tpu_custom_call.1} parent=5 // pred_check
        %p127 = pneg %p126
      $region14: #{tpu_custom_call.1} parent=5 // pred_check_branch
        %129 = sbr.rel (%p127) target = $region16
      $region15: #{tpu_custom_call.1} parent=5 // pred_region
        // Predicated region
        $region17: #{tpu_custom_call.1} parent=15 // pred_check
          %p130 = pneg %p49
        $region18: #{tpu_custom_call.1} parent=15 // pred_check_branch
          %132 = sbr.rel (%p130) target = $region20
        $region19: #{tpu_custom_call.1} parent=15 // pred_region
          %s133 = sand.u32 %s39, 1
          %s134 = scalar_lea.sflag [#allocation3], %s133
          %s135 = sand.u32 %s39, 1
          %s136 = smul.addr %s135, 8
          %s137 = scalar_lea.vmem [#allocation2], %s136
          %s139 = ssub.s32 128, 128
          %140 = vsyncadd %s134, %s139
          %s141 = smul.addr %s24, 128
          %s142 = scalar_lea.hbm %s0, %s141
          %s144 = sshll.u32 %s137, 4
          %s145 = int_to_ptr.vmem [resolvable:$true] %s144
          %147 = dma.hbm_to_vmem [thread:$0]  %s142, 128, %s145, %s134
        $region20: #{tpu_custom_call.1} parent=15 // pred_fallthru
          _
        // Predicated region
        $region21: #{tpu_custom_call.1} parent=15 // pred_check
          %p148 = pneg %p77
        $region22: #{tpu_custom_call.1} parent=15 // pred_check_branch
          %150 = sbr.rel (%p148) target = $region24
        $region23: #{tpu_custom_call.1} parent=15 // pred_region
          %s151 = sand.u32 %s67, 1
          %s152 = scalar_lea.sflag [#allocation6], %s151
          %s153 = sand.u32 %s67, 1
          %s154 = smul.addr %s153, 80
          %s155 = scalar_lea.vmem [#allocation5], %s154
          %s156 = smul.u32 2, %s25
          %s158 = ssub.s32 1280, 1280
          %159 = vsyncadd %s152, %s158
          %s160 = smul.addr %s24, 10
          %s161 = sadd.s32 %s156, %s160
          %s162 = smul.addr %s161, 128
          %s163 = scalar_lea.hbm %s1, %s162
          %s164 = sshll.u32 %s155, 4
          %s165 = int_to_ptr.vmem [resolvable:$true] %s164
          %170 = dma.hbm_to_vmem [thread:$0]  %s163, 1280, %s165, %s152, 256, 256, 16
        $region24: #{tpu_custom_call.1} parent=15 // pred_fallthru
          _
      $region16: #{tpu_custom_call.1} parent=5 // pred_fallthru
        _
      %p171 = scmp.le.s32.totalorder 1, %s17
      %p172 = scmp.lt.s32.totalorder %s17, 3
      %p173 = pnand %p171, %p172
      %p174 = pneg %p173
      // Predicated region
      $region25: #{tpu_custom_call.1} parent=5 // pred_check
        _
      $region26: #{tpu_custom_call.1} parent=5 // pred_check_branch
        %176 = sbr.rel (%p173) target = $region28
      $region27: #{tpu_custom_call.1} parent=5 // pred_region
        %s177 = ssub.s32 %s17, 1
        %s178 = sand.u32 %s42, 1
        %s179 = scalar_lea.sflag [#allocation3], %s178
        %s180 = sand.u32 %s42, 1
        %s181 = smul.addr %s180, 8
        %s182 = scalar_lea.vmem [#allocation2], %s181
        // Predicated region
        $region29: #{tpu_custom_call.1} parent=27 // pred_check
          %p183 = pneg %p55
        $region30: #{tpu_custom_call.1} parent=27 // pred_check_branch
          %185 = sbr.rel (%p183) target = $region32
        $region31: #{tpu_custom_call.1} parent=27 // pred_region
          %186 = dma.done %s179, 128
        $region32: #{tpu_custom_call.1} parent=27 // pred_fallthru
          _
        %s187 = sand.u32 %s70, 1
        %s188 = scalar_lea.sflag [#allocation6], %s187
        %s189 = sand.u32 %s70, 1
        %s190 = smul.addr %s189, 80
        %s191 = scalar_lea.vmem [#allocation5], %s190
        // Predicated region
        $region33: #{tpu_custom_call.1} parent=27 // pred_check
          %p192 = pneg %p83
        $region34: #{tpu_custom_call.1} parent=27 // pred_check_branch
          %194 = sbr.rel (%p192) target = $region36
        $region35: #{tpu_custom_call.1} parent=27 // pred_region
          %195 = dma.done %s188, 1280
        $region36: #{tpu_custom_call.1} parent=27 // pred_fallthru
          _
        %s196 = sand.u32 %s42, 1
        %s197 = scalar_lea.sflag [#allocation3], %s196
        %s198 = sand.u32 %s42, 1
        %s199 = smul.addr %s198, 8
        %s200 = scalar_lea.vmem [#allocation2], %s199
        %p201 = pneg %p55
        %p202 = pneg %p52
        %s203 = sand.u32 %s70, 1
        %s204 = scalar_lea.sflag [#allocation6], %s203
        %s205 = sand.u32 %s70, 1
        %s206 = smul.addr %s205, 80
        %s207 = scalar_lea.vmem [#allocation5], %s206
        %p208 = pneg %p83
        %p209 = pneg %p80
        %p210 = pneg %p111
        %p211 = pneg %p108
        %s212 = sand.u32 %s98, 1
        %s213 = scalar_lea.sflag [#allocation4], %s212
        %s214 = sand.u32 %s98, 1
        %s215 = smul.addr %s214, 16
        %s216 = scalar_lea.vmem [#allocation7], %s215
        %s217 = smul.u32 2, %s27
        %s218 = smul.u32 2, %s27
        %v219 = vld [vmem:[%s182] sm:$0xff]
        %v220 = vld [vmem:[%s191] sm:$0xff]
        %v221 = vld [vmem:[%s191 + $0x8] sm:$0xff]
        %v222 = vld [vmem:[%s191 + $0x10] sm:$0xff]
        %v223 = vld [vmem:[%s191 + $0x18] sm:$0xff]
        %v224 = vld [vmem:[%s191 + $0x20] sm:$0xff]
        %v225 = vld [vmem:[%s191 + $0x28] sm:$0xff]
        %v226 = vld [vmem:[%s191 + $0x30] sm:$0xff]
        %v227 = vld [vmem:[%s191 + $0x38] sm:$0xff]
        %v228 = vld [vmem:[%s191 + $0x40] sm:$0xff]
        %v229 = vld [vmem:[%s191 + $0x48] sm:$0xff]
        %vm230 = vcmask 326656
        %v232 = vsel %vm230, %v219, 0
        %234 = vmatprep.subr.mxu0 %v221
        %235 = vmatpush1.msra.mxu0 %v220
        %236 = vmatprep.subr.mxu0 %v223
        %237 = vmatpush1.msra.mxu0 %v222
        %238 = vmatprep.subr.mxu0 %v225
        %239 = vmatpush1.msra.mxu0 %v224
        %240 = vmatprep.subr.mxu0 %v227
        %241 = vmatpush1.msra.mxu0 %v226
        %242 = vmatprep.subr.mxu0 %v229
        %243 = vmatpush1.msra.mxu0 %v228
        %244 = vmatprep.subr.mxu0 0.0
        %245 = vmatpush1.msra.mxu0 0.0
        %246 = vmatprep.subr.mxu0 0.0
        %247 = vmatpush1.msra.mxu0 0.0
        %248 = vmatprep.subr.mxu0 0.0
        %249 = vmatpush1.msra.mxu0 0.0
        %250 = vmatprep.subr.mxu0 0.0
        %251 = vmatpush1.msra.mxu0 0.0
        %252 = vmatprep.subr.mxu0 0.0
        %253 = vmatpush1.msra.mxu0 0.0
        %254 = vmatprep.subr.mxu0 0.0
        %255 = vmatpush1.msra.mxu0 0.0
        %256 = vmatprep.subr.mxu0 0.0
        %257 = vmatpush1.msra.mxu0 0.0
        %258 = vmatprep.subr.mxu0 0.0
        %259 = vmatpush1.msra.mxu0 0.0
        %260 = vmatprep.subr.mxu0 0.0
        %261 = vmatpush1.msra.mxu0 0.0
        %262 = vmatprep.subr.mxu0 0.0
        %263 = vmatpush1.msra.mxu0 0.0
        %264 = vmatprep.subr.mxu0 0.0
        %265 = vmatpush1.msra.mxu0 0.0
        %266 = vmatprep.subr.mxu0 0.0
        %267 = vmatpush1.msra.mxu0 0.0
        %268 = vmatprep.subr.mxu0 0.0
        %269 = vmatpush1.msra.mxu0 0.0
        %270 = vmatprep.subr.mxu0 0.0
        %271 = vmatpush1.msra.mxu0 0.0
        %272 = vmatprep.subr.mxu0 0.0
        %273 = vmatpush1.msra.mxu0 0.0
        %274 = vmatprep.subr.mxu0 0.0
        %275 = vmatpush1.msra.mxu0 0.0
        %276 = vmatprep.subr.mxu0 0.0
        %277 = vmatpush1.msra.mxu0 0.0
        %278 = vmatprep.subr.mxu0 0.0
        %279 = vmatpush1.msra.mxu0 0.0
        %280 = vmatprep.subr.mxu0 0.0
        %281 = vmatpush1.msra.mxu0 0.0
        %282 = vmatprep.subr.mxu0 0.0
        %283 = vmatpush1.msra.mxu0 0.0
        %284 = vmatprep.subr.mxu0 0.0
        %285 = vmatpush1.msra.mxu0 0.0
        %286 = vmatprep.subr.mxu0 0.0
        %287 = vmatpush1.msra.mxu0 0.0
        %288 = vmatprep.subr.mxu0 0.0
        %289 = vmatpush1.msra.mxu0 0.0
        %290 = vmatprep.subr.mxu0 0.0
        %291 = vmatpush1.msra.mxu0 0.0
        %292 = vmatprep.subr.mxu0 0.0
        %293 = vmatpush1.msra.mxu0 0.0
        %294 = vmatprep.subr.mxu0 0.0
        %295 = vmatpush1.msra.mxu0 0.0
        %296 = vmatprep.subr.mxu0 0.0
        %297 = vmatpush1.msra.mxu0 0.0
        %298 = vmatprep.mubr.f32.mxu0 0.0
        %299 = vmatmul.mubr.f32.gmra.mrb[0].mxu0 %v232
        %v300 = vpop.f32.mrb[0].mxu0
        %v301 = vadd.f32 0.0, %v300
        %v302 = vpop.f32.mrb[0].mxu0
        %v303 = vadd.f32 0.0, %v302
        %304 = vdwg.mxu0
        %305 = vst [vmem:[%s216] sm:$0xff] %v301
        %306 = vst [vmem:[%s216 + $0x8] sm:$0xff] %v303
        %s307 = sand.u32 %s98, 1
        %s308 = scalar_lea.sflag [#allocation4], %s307
        %s309 = sand.u32 %s98, 1
        %s310 = smul.addr %s309, 16
        %s311 = scalar_lea.vmem [#allocation7], %s310
        // Predicated region
        $region37: #{tpu_custom_call.1} parent=27 // pred_check
          %p312 = pneg %p108
        $region38: #{tpu_custom_call.1} parent=27 // pred_check_branch
          %314 = sbr.rel (%p312) target = $region40
        $region39: #{tpu_custom_call.1} parent=27 // pred_region
          %s315 = smul.u32 2, %s27
          %s317 = ssub.s32 256, 256
          %318 = vsyncadd %s308, %s317
          %s319 = smul.addr %s26, 2
          %s320 = sadd.s32 %s315, %s319
          %s321 = smul.addr %s320, 128
          %s322 = scalar_lea.hbm %s2, %s321
          %s324 = sshll.u32 %s311, 4
          %s325 = int_to_ptr.vmem [resolvable:$true] %s324
          %327 = dma.vmem_to_hbm [thread:$0]  %s325, 256, %s322, %s308
        $region40: #{tpu_custom_call.1} parent=27 // pred_fallthru
          _
      $region28: #{tpu_custom_call.1} parent=5 // pred_fallthru
        _
      %p328 = scmp.le.s32.totalorder 2, %s17
      // Predicated region
      $region41: #{tpu_custom_call.1} parent=5 // pred_check
        %p329 = pneg %p328
      $region42: #{tpu_custom_call.1} parent=5 // pred_check_branch
        %331 = sbr.rel (%p329) target = $region44
      $region43: #{tpu_custom_call.1} parent=5 // pred_region
        %s332 = ssub.s32 %s17, 2
        // Predicated region
        $region45: #{tpu_custom_call.1} parent=43 // pred_check
          %p333 = pneg %p114
        $region46: #{tpu_custom_call.1} parent=43 // pred_check_branch
          %335 = sbr.rel (%p333) target = $region48
        $region47: #{tpu_custom_call.1} parent=43 // pred_region
          %s336 = sand.u32 %s99, 1
          %s337 = scalar_lea.sflag [#allocation4], %s336
          %s338 = sand.u32 %s99, 1
          %s339 = smul.addr %s338, 16
          %s340 = scalar_lea.vmem [#allocation7], %s339
          %341 = dma.done %s337, 256
        $region48: #{tpu_custom_call.1} parent=43 // pred_fallthru
          _
      $region44: #{tpu_custom_call.1} parent=5 // pred_fallthru
        _
    $region6: #{tpu_custom_call.1} parent=1 // loop_footer
      %s21 = sadd.s32 1, %s17
    $region7: #{tpu_custom_call.1} parent=1 // loop_footer_branch
      %16 = sbr.rel target = $region3
    $region8: #{tpu_custom_call.1} parent=1 // loop_exit
      _
    %342 = vsyncpa [#allocation3], 1
    %s343 = scalar_lea.sflag [#allocation3], 1
    %344 = vsyncpa %s343, 1
    %345 = vsyncpa [#allocation6], 1
    %s346 = scalar_lea.sflag [#allocation6], 1
    %347 = vsyncpa %s346, 1
    %348 = vsyncpa [#allocation4], 1
    %s349 = scalar_lea.sflag [#allocation4], 1
    %350 = vsyncpa %s349, 1

</llo_original>
